<compile_context>
chip_gen: v5e
topology: v5e:2x2
jax: 0.10.0
libtpu: 0.0.40
codegen_flags: <defaults>
</compile_context>

<pallas_src>
import jax
import jax.numpy as jnp
from jax.experimental import pallas as pl
from jax.experimental.pallas import tpu as pltpu  # noqa: F401 (TPU backend)

# ----- static problem sizes (consistent with the module) -----
B = 2        # batch
INP = 32     # inp_size  (conv in-channels, last_context width)
OUT = 32     # out_size  (conv out-channels, output width)
K = 3        # kernel_size
L = 8        # dec_states sequence length
L_OUT = L - K + 1            # 6 valid conv positions per batch row
N_ROWS = B * L - (K - 1)     # 14: patch-matrix row r <-> flattened (b, t) = r


def context_kernel(x_ref, wconv_ref, bconv_ref, lc_ref, wlin_ref, blin_ref,
                   out_ref):
    # x_ref     : (B*L, INP)      dec_states, time-major rows, channels on lanes
    # wconv_ref : (K*INP, OUT)    conv weight, row index = k*INP + i
    # bconv_ref : (1, OUT)        conv bias
    # lc_ref    : (B, INP)        last_context
    # wlin_ref  : (INP+OUT, OUT)  fused linear weight (= lin_w.T)
    # blin_ref  : (1, OUT)        linear bias
    # out_ref   : (B, OUT)        new_context
    x = x_ref[...]                                             # (B*L, INP)

    # im2col: patches[r, k*INP + i] = x[r + k, i]  (lane-concat of K slices)
    patches = jnp.concatenate(
        [x[k:k + N_ROWS, :] for k in range(K)], axis=-1)       # (14, K*INP)

    # entire Conv1d as a single MXU matmul, f32 accumulation
    h = jnp.tanh(
        jnp.dot(patches, wconv_ref[...], preferred_element_type=jnp.float32)
        + bconv_ref[...])                                       # (14, OUT)

    # mean over valid time steps per batch as a pooling matmul; 1/L_OUT of the
    # mean is folded into the pooling weights and invalid (cross-batch) patch
    # rows get weight 0.
    r = jax.lax.broadcasted_iota(jnp.int32, (B, N_ROWS), 1)
    bi = jax.lax.broadcasted_iota(jnp.int32, (B, N_ROWS), 0)
    valid = (r >= bi * L) & (r < bi * L + L_OUT)
    pool = jnp.where(valid, jnp.float32(1.0 / L_OUT), jnp.float32(0.0))
    feature = jnp.dot(pool, h, preferred_element_type=jnp.float32)  # (B, OUT)

    # fused Linear on concat([last_context, feature]): one lane-concat + matmul
    cat = jnp.concatenate([lc_ref[...], feature], axis=-1)      # (B, INP+OUT)
    out = jnp.tanh(
        jnp.dot(cat, wlin_ref[...], preferred_element_type=jnp.float32)
        + blin_ref[...])
    # TODO(synk): if the (2, 32) masked store ever shows up in profiles, pad
    # OUT to 128 lanes in out_shape and slice outside the kernel.
    out_ref[...] = out.astype(out_ref.dtype)


def context_layer(last_context, dec_states, conv_w, conv_b, lin_w, lin_b):
    """last_context (B, INP); dec_states (B, INP, L) [NCW]; returns (B, OUT)."""
    # Activation re-layout: NCW -> time-major (B*L, INP); one transpose, the
    # reshape is a free contiguous merge.
    x = jnp.transpose(dec_states, (0, 2, 1)).reshape(B * L, INP)
    # Parameter re-layouts (static; in a real model these would be done once
    # at parameter-load time, outside the hot path).
    wconv = jnp.transpose(conv_w, (2, 1, 0)).reshape(K * INP, OUT)  # k-major rows
    bconv = conv_b.reshape(1, OUT)
    wlin = jnp.transpose(lin_w)          # (INP+OUT, OUT); rows = [lc | feature]
    blin = lin_b.reshape(1, OUT)

    # Single program, no grid: every operand is one full-array VMEM block.
    return pl.pallas_call(
        context_kernel,
        out_shape=jax.ShapeDtypeStruct((B, OUT), last_context.dtype),
    )(x, wconv, bconv, last_context, wlin, blin)


def reference(last_context, dec_states, conv_w, conv_b, lin_w, lin_b):
    """Pure-JAX reference mirroring the PyTorch forward."""
    h = jax.lax.conv_general_dilated(
        dec_states, conv_w, window_strides=(1,), padding="VALID",
        dimension_numbers=("NCH", "OIH", "NCH"))
    h = h + conv_b[None, :, None]
    feature = jnp.tanh(h).mean(axis=2)
    cat = jnp.concatenate([last_context, feature], axis=1)
    return jnp.tanh(cat @ lin_w.T + lin_b)


if __name__ == "__main__":
    key = jax.random.PRNGKey(0)
    k1, k2, k3, k4, k5, k6 = jax.random.split(key, 6)

    # deterministic synthetic parameters (shapes per ContextLayer.__init__)
    conv_w = 0.1 * jax.random.normal(k1, (OUT, INP, K), jnp.float32)    # Conv1d weight
    conv_b = 0.1 * jax.random.normal(k2, (OUT,), jnp.float32)           # Conv1d bias
    lin_w = 0.1 * jax.random.normal(k3, (OUT, OUT + INP), jnp.float32)  # Linear weight
    lin_b = 0.1 * jax.random.normal(k4, (OUT,), jnp.float32)            # Linear bias

    # inputs
    last_context = jax.random.normal(k5, (B, INP), jnp.float32)
    dec_states = jax.random.normal(k6, (B, INP, L), jnp.float32)        # NCW

    fn = jax.jit(context_layer)
    out = jax.block_until_ready(
        fn(last_context, dec_states, conv_w, conv_b, lin_w, lin_b))

    ref = reference(last_context, dec_states, conv_w, conv_b, lin_w, lin_b)
    assert out.shape == (B, OUT)
    assert jnp.allclose(out, ref, rtol=1e-5, atol=1e-5), "mismatch vs reference"

    print("KERNEL_OK")
</pallas_src>

<mosaic_0001>
module attributes {stable_mosaic.version = 11 : i64} {
  func.func @context_kernel(%arg0: memref<16x32xf32, #tpu.memory_space<vmem>>, %arg1: memref<96x32xf32, #tpu.memory_space<vmem>>, %arg2: memref<1x32xf32, #tpu.memory_space<vmem>>, %arg3: memref<2x32xf32, #tpu.memory_space<vmem>>, %arg4: memref<64x32xf32, #tpu.memory_space<vmem>>, %arg5: memref<1x32xf32, #tpu.memory_space<vmem>>, %arg6: memref<2x32xf32, #tpu.memory_space<vmem>>) attributes {dimension_semantics = [], scalar_prefetch = 0 : i64, scratch_operands = 0 : i64, tpu.core_type = #tpu.core_type<tc>} {
    %c0 = arith.constant 0 : index
    %c0_0 = arith.constant 0 : index
    %0 = vector.load %arg0[%c0, %c0_0] : memref<16x32xf32, #tpu.memory_space<vmem>>, vector<16x32xf32>
    %1 = vector.extract_strided_slice %0 {offsets = [0, 0], sizes = [14, 32], strides = [1, 1]} : vector<16x32xf32> to vector<14x32xf32>
    %2 = vector.extract_strided_slice %0 {offsets = [1, 0], sizes = [14, 32], strides = [1, 1]} : vector<16x32xf32> to vector<14x32xf32>
    %3 = vector.extract_strided_slice %0 {offsets = [2, 0], sizes = [14, 32], strides = [1, 1]} : vector<16x32xf32> to vector<14x32xf32>
    %4 = tpu.concatenate %1, %2, %3 in 1 : vector<14x32xf32>, vector<14x32xf32>, vector<14x32xf32> -> vector<14x96xf32>
    %c0_1 = arith.constant 0 : index
    %c0_2 = arith.constant 0 : index
    %5 = vector.load %arg1[%c0_1, %c0_2] : memref<96x32xf32, #tpu.memory_space<vmem>>, vector<96x32xf32>
    %cst = arith.constant dense<0.000000e+00> : vector<14x32xf32>
    %6 = tpu.matmul %4, %5, %cst {dimension_numbers = #tpu.dot_dimension_numbers<[1], [0], [0], [1], [0, 0, 1, 1], [], []>} : vector<14x96xf32>, vector<96x32xf32>, vector<14x32xf32> -> vector<14x32xf32>
    %c0_3 = arith.constant 0 : index
    %c0_4 = arith.constant 0 : index
    %7 = vector.load %arg2[%c0_3, %c0_4] : memref<1x32xf32, #tpu.memory_space<vmem>>, vector<1x32xf32>
    %8 = vector.broadcast %7 : vector<1x32xf32> to vector<14x32xf32>
    %9 = arith.addf %6, %8 : vector<14x32xf32>
    %10 = math.tanh %9 : vector<14x32xf32>
    %11 = tpu.iota {dimensions = array<i32: 1>} : vector<2x14xi32>
    %12 = tpu.iota {dimensions = array<i32: 0>} : vector<2x14xi32>
    %c8_i32 = arith.constant 8 : i32
    %13 = vector.broadcast %c8_i32 : i32 to vector<2x14xi32>
    %14 = arith.muli %12, %13 : vector<2x14xi32>
    %15 = arith.cmpi sge, %11, %14 : vector<2x14xi32>
    %c8_i32_5 = arith.constant 8 : i32
    %16 = vector.broadcast %c8_i32_5 : i32 to vector<2x14xi32>
    %17 = arith.muli %12, %16 : vector<2x14xi32>
    %c6_i32 = arith.constant 6 : i32
    %18 = vector.broadcast %c6_i32 : i32 to vector<2x14xi32>
    %19 = arith.addi %17, %18 : vector<2x14xi32>
    %20 = arith.cmpi slt, %11, %19 : vector<2x14xi32>
    %21 = arith.andi %15, %20 : vector<2x14xi1>
    %cst_6 = arith.constant 0.166666672 : f32
    %cst_7 = arith.constant 0.000000e+00 : f32
    %22 = vector.broadcast %cst_6 : f32 to vector<2x14xf32>
    %23 = vector.broadcast %cst_7 : f32 to vector<2x14xf32>
    %24 = arith.select %21, %22, %23 : vector<2x14xi1>, vector<2x14xf32>
    %cst_8 = arith.constant dense<0.000000e+00> : vector<2x32xf32>
    %25 = tpu.matmul %24, %10, %cst_8 {dimension_numbers = #tpu.dot_dimension_numbers<[1], [0], [0], [1], [0, 0, 1, 1], [], []>} : vector<2x14xf32>, vector<14x32xf32>, vector<2x32xf32> -> vector<2x32xf32>
    %c0_9 = arith.constant 0 : index
    %c0_10 = arith.constant 0 : index
    %26 = vector.load %arg3[%c0_9, %c0_10] : memref<2x32xf32, #tpu.memory_space<vmem>>, vector<2x32xf32>
    %27 = tpu.concatenate %26, %25 in 1 : vector<2x32xf32>, vector<2x32xf32> -> vector<2x64xf32>
    %c0_11 = arith.constant 0 : index
    %c0_12 = arith.constant 0 : index
    %28 = vector.load %arg4[%c0_11, %c0_12] : memref<64x32xf32, #tpu.memory_space<vmem>>, vector<64x32xf32>
    %cst_13 = arith.constant dense<0.000000e+00> : vector<2x32xf32>
    %29 = tpu.matmul %27, %28, %cst_13 {dimension_numbers = #tpu.dot_dimension_numbers<[1], [0], [0], [1], [0, 0, 1, 1], [], []>} : vector<2x64xf32>, vector<64x32xf32>, vector<2x32xf32> -> vector<2x32xf32>
    %c0_14 = arith.constant 0 : index
    %c0_15 = arith.constant 0 : index
    %30 = vector.load %arg5[%c0_14, %c0_15] : memref<1x32xf32, #tpu.memory_space<vmem>>, vector<1x32xf32>
    %31 = vector.broadcast %30 : vector<1x32xf32> to vector<2x32xf32>
    %32 = arith.addf %29, %31 : vector<2x32xf32>
    %33 = math.tanh %32 : vector<2x32xf32>
    %c0_16 = arith.constant 0 : index
    %c0_17 = arith.constant 0 : index
    %34 = vector.load %arg6[%c0_16, %c0_17] : memref<2x32xf32, #tpu.memory_space<vmem>>, vector<2x32xf32>
    tpu.vector_store %arg6[%c0_16, %c0_17], %33 {strides = array<i32>} : memref<2x32xf32, #tpu.memory_space<vmem>>, vector<2x32xf32>,
    return
  }
}

</mosaic_0001>

<llo_original>
// kernel: context_layer.1
$region0: #{context_layer.1}
  #allocation0 [shape = 'u32[]', space=smem, size = 0x4, offset = 0x4, fixed_abs, tag = 'smem constant byte address 0x4 - core index']
  #allocation1 [shape = 'u32[72,128]{1,0:T(1,128)}', space=vmem, size = 0x9000, scoped, tag = 'internal scratch']
  %s0 = inlined_call_operand.vmem [shape: f32[16,32], index: 0, kind: input, shape index: {}]
  %s1 = inlined_call_operand.vmem [shape: f32[96,32], index: 1, kind: input, shape index: {}]
  %s2 = inlined_call_operand.vmem [shape: f32[1,32], index: 2, kind: input, shape index: {}]
  %s3 = inlined_call_operand.vmem [shape: f32[2,32], index: 3, kind: input, shape index: {}]
  %s4 = inlined_call_operand.vmem [shape: f32[64,32], index: 4, kind: input, shape index: {}]
  %s5 = inlined_call_operand.vmem [shape: f32[1,32], index: 5, kind: input, shape index: {}]
  %s6 = inlined_call_operand.hbm [shape: f32[2,32], index: 6, kind: output, shape index: {}]
  %s7 = sld [smem:[#allocation0]]
  $region34: #{context_layer.1} parent=0
    _
  %s9 = ssub.s32 1, %s7
  %s10 = scalar_select 0, %s9, %s7
  $region1: #{context_layer.1} parent=0
    #allocation2 [shape = 'u8[1024]{0}', space=vmem, size = 0x400, scoped, tag = 'output window, operand 0, single buffered']
    #allocation3 [shape = 's32[1]{0}', space=sflag, size = 0x4, scoped, tag = 'scoped memory for context_layer.1']
    %11 = vsyncpa [#allocation3], 0
    // Predicated region
    $region2: #{context_layer.1} parent=1 // pred_check
      _
    $region3: #{context_layer.1} parent=1 // pred_check_branch
      %13 = sbr.rel (0) target = $region5
    $region4: #{context_layer.1} parent=1 // pred_region
      _
    $region5: #{context_layer.1} parent=1 // pred_fallthru
      _
    // Predicated region
    $region6: #{context_layer.1} parent=1 // pred_check
      _
    $region7: #{context_layer.1} parent=1 // pred_check_branch
      %15 = sbr.rel (0) target = $region9
    $region8: #{context_layer.1} parent=1 // pred_region
      _
    $region9: #{context_layer.1} parent=1 // pred_fallthru
      _
    // Predicated region
    $region10: #{context_layer.1} parent=1 // pred_check
      _
    $region11: #{context_layer.1} parent=1 // pred_check_branch
      %17 = sbr.rel (0) target = $region13
    $region12: #{context_layer.1} parent=1 // pred_region
      _
    $region13: #{context_layer.1} parent=1 // pred_fallthru
      _
    // Predicated region
    $region14: #{context_layer.1} parent=1 // pred_check
      _
    $region15: #{context_layer.1} parent=1 // pred_check_branch
      %19 = sbr.rel (0) target = $region17
    $region16: #{context_layer.1} parent=1 // pred_region
      _
    $region17: #{context_layer.1} parent=1 // pred_fallthru
      _
    // Predicated region
    $region18: #{context_layer.1} parent=1 // pred_check
      _
    $region19: #{context_layer.1} parent=1 // pred_check_branch
      %21 = sbr.rel (0) target = $region21
    $region20: #{context_layer.1} parent=1 // pred_region
      _
    $region21: #{context_layer.1} parent=1 // pred_fallthru
      _
    // Predicated region
    $region22: #{context_layer.1} parent=1 // pred_check
      _
    $region23: #{context_layer.1} parent=1 // pred_check_branch
      %23 = sbr.rel (0) target = $region25
    $region24: #{context_layer.1} parent=1 // pred_region
      _
    $region25: #{context_layer.1} parent=1 // pred_fallthru
      _
    %v24 = vld [vmem:[%s0] sm:$0xff]
    %v25 = vld [vmem:[%s0 + $0x8] sm:$0xff]
    %vm28 = vcmask 1046528
    %v29 = vrot.slane %v24, 1
    %v30 = vrot.slane %v25, 1
    %v31 = vsel %vm28, %v29, %v30
    %32 = vrot.lane.b32.xlu0 %v31, 32
    %v33 = vpop.permute.xlu0 %32
    %34 = vrot.lane.b32.xlu0 %v30, 32
    %v35 = vpop.permute.xlu0 %34
    %vm38 = vcmask 1045504
    %v39 = vrot.slane %v24, 2
    %v40 = vrot.slane %v25, 2
    %v41 = vsel %vm38, %v39, %v40
    %42 = vrot.lane.b32.xlu0 %v41, 64
    %v43 = vpop.permute.xlu0 %42
    %44 = vrot.lane.b32.xlu0 %v40, 64
    %v45 = vpop.permute.xlu0 %44
    %vm48 = vcmask 261120
    %v49 = vsel %vm48, %v24, %v33
    %v50 = vsel %vm48, %v25, %v35
    %vm51 = vcmask 523264
    %v52 = vsel %vm51, %v49, %v43
    %v53 = vsel %vm51, %v50, %v45
    %v54 = vld [vmem:[%s1] sm:$0xff]
    %v55 = vld [vmem:[%s1 + $0x8] sm:$0xff]
    %v56 = vld [vmem:[%s1 + $0x10] sm:$0xff]
    %v57 = vld [vmem:[%s1 + $0x18] sm:$0xff]
    %v58 = vld [vmem:[%s1 + $0x20] sm:$0xff]
    %v59 = vld [vmem:[%s1 + $0x28] sm:$0xff]
    %v60 = vld [vmem:[%s1 + $0x30] sm:$0xff]
    %v61 = vld [vmem:[%s1 + $0x38] sm:$0xff]
    %v62 = vld [vmem:[%s1 + $0x40] sm:$0xff]
    %v63 = vld [vmem:[%s1 + $0x48] sm:$0xff]
    %v64 = vld [vmem:[%s1 + $0x50] sm:$0xff]
    %v65 = vld [vmem:[%s1 + $0x58] sm:$0xff]
    %v66 = vld [vmem:[%s2] sm:$0x1]
    %v68 = vperm.slane %v66, 0
    %vm70 = vcmask 785408
    %v72 = vsel %vm70, %v52, 0
    %v75 = vsel %vm70, %v53, 0
    %77 = vmatpush.msra.mxu0 0.0
    %78 = vmatpush.msra.mxu0 0.0
    %79 = vmatpush.msra.mxu0 0.0
    %80 = vmatpush.msra.mxu0 0.0
    %81 = vmatpush.msra.mxu0 %v65
    %82 = vmatpush.msra.mxu0 %v64
    %83 = vmatpush.msra.mxu0 %v63
    %84 = vmatpush.msra.mxu0 %v62
    %85 = vmatpush.msra.mxu0 %v61
    %86 = vmatpush.msra.mxu0 %v60
    %87 = vmatpush.msra.mxu0 %v59
    %88 = vmatpush.msra.mxu0 %v58
    %89 = vmatpush.msra.mxu0 %v57
    %90 = vmatpush.msra.mxu0 %v56
    %91 = vmatpush.msra.mxu0 %v55
    %92 = vmatpush.msra.mxu0 %v54
    %93 = vmatmul.f32.gmra.mxu0 %v72
    %v94 = vpop.f32.mrf.mxu0
    %v95 = vadd.f32 %v68, %v94
    %96 = vmatmul.f32.gmra.mxu0 %v75
    %v97 = vpop.f32.mrf.mxu0
    %v98 = vadd.f32 %v68, %v97
    %99 = vdwg.mxu0
    %v100 = vtanh.pop %v95
    %v101 = vtanh.pop %v98
    %v102 = vlaneseq
    %v103 = vand.u32 %v102, 127
    %v104 = vlaneseq
    %v105 = vshrl.u32 %v104, 7
    %v106 = vmul.u32 %v105, 8
    %vm107 = vcmp.ge.s32.totalorder %v103, %v106
    %v108 = vadd.s32 %v106, 6
    %vm109 = vcmp.lt.s32.totalorder %v103, %v108
    %vm110 = vmand %vm107, %vm109
    %v111 = vsel %vm110, 0.16666667, 0.0
    %vm112 = vcmask 113664
    %v114 = vsel %vm112, %v111, 0
    %v117 = vsel %vm38, %v101, 0
    %119 = vmatpush.msra.mxu0 0.0
    %120 = vmatpush.msra.mxu0 0.0
    %121 = vmatpush.msra.mxu0 0.0
    %122 = vmatpush.msra.mxu0 0.0
    %123 = vmatpush.msra.mxu0 0.0
    %124 = vmatpush.msra.mxu0 0.0
    %125 = vmatpush.msra.mxu0 0.0
    %126 = vmatpush.msra.mxu0 0.0
    %127 = vmatpush.msra.mxu0 0.0
    %128 = vmatpush.msra.mxu0 0.0
    %129 = vmatpush.msra.mxu0 0.0
    %130 = vmatpush.msra.mxu0 0.0
    %131 = vmatpush.msra.mxu0 0.0
    %132 = vmatpush.msra.mxu0 0.0
    %133 = vmatpush.msra.mxu0 %v117
    %134 = vmatpush.msra.mxu0 %v100
    %135 = vmatmul.f32.gmra.mxu0 %v114
    %v136 = vpop.f32.mrf.mxu0
    %v137 = vadd.f32 0.0, %v136
    %138 = vdwg.mxu0
    %v139 = vld [vmem:[%s3] sm:$0x3]
    %141 = vrot.lane.b32.xlu0 %v137, 32
    %v142 = vpop.permute.xlu0 %141
    %v144 = vsel %vm48, %v139, %v142
    %v145 = vld [vmem:[%s4] sm:$0xff]
    %v146 = vld [vmem:[%s4 + $0x8] sm:$0xff]
    %v147 = vld [vmem:[%s4 + $0x10] sm:$0xff]
    %v148 = vld [vmem:[%s4 + $0x18] sm:$0xff]
    %v149 = vld [vmem:[%s4 + $0x20] sm:$0xff]
    %v150 = vld [vmem:[%s4 + $0x28] sm:$0xff]
    %v151 = vld [vmem:[%s4 + $0x30] sm:$0xff]
    %v152 = vld [vmem:[%s4 + $0x38] sm:$0xff]
    %v153 = vld [vmem:[%s5] sm:$0x1]
    %v155 = vperm.slane %v153, 0
    %v158 = vsel %vm51, %v144, 0
    %160 = vmatpush.msra.mxu0 0.0
    %161 = vmatpush.msra.mxu0 0.0
    %162 = vmatpush.msra.mxu0 0.0
    %163 = vmatpush.msra.mxu0 0.0
    %164 = vmatpush.msra.mxu0 0.0
    %165 = vmatpush.msra.mxu0 0.0
    %166 = vmatpush.msra.mxu0 0.0
    %167 = vmatpush.msra.mxu0 0.0
    %168 = vmatpush.msra.mxu0 %v152
    %169 = vmatpush.msra.mxu0 %v151
    %170 = vmatpush.msra.mxu0 %v150
    %171 = vmatpush.msra.mxu0 %v149
    %172 = vmatpush.msra.mxu0 %v148
    %173 = vmatpush.msra.mxu0 %v147
    %174 = vmatpush.msra.mxu0 %v146
    %175 = vmatpush.msra.mxu0 %v145
    %176 = vmatmul.f32.gmra.mxu0 %v158
    %v177 = vpop.f32.mrf.mxu0
    %v178 = vadd.f32 %v155, %v177
    %179 = vdwg.mxu0
    %v180 = vtanh.pop %v178
    %vm181 = vcmask 254976
    %182 = vst.msk [vmem:[#allocation2] sm:$0x3] %vm181, %v180
    // Predicated region
    $region26: #{context_layer.1} parent=1 // pred_check
      _
    $region27: #{context_layer.1} parent=1 // pred_check_branch
      %184 = sbr.rel (0) target = $region29
    $region28: #{context_layer.1} parent=1 // pred_region
      %186 = vsyncadd [#allocation3], 0
      %s188 = sshll.u32 [#allocation2], 4
      %s189 = int_to_ptr.vmem [resolvable:$true] %s188
      %s190 = sshll.u32 %s6, 4
      %s191 = int_to_ptr.hbm [resolvable:$true] %s190
      %193 = dma.vmem_to_hbm [thread:$0]  %s189, 32, %s191, [#allocation3]
    $region29: #{context_layer.1} parent=1 // pred_fallthru
      _
    // Predicated region
    $region30: #{context_layer.1} parent=1 // pred_check
      _
    $region31: #{context_layer.1} parent=1 // pred_check_branch
      %195 = sbr.rel (0) target = $region33
    $region32: #{context_layer.1} parent=1 // pred_region
      %197 = dma.done [#allocation3], 32
    $region33: #{context_layer.1} parent=1 // pred_fallthru
      _
    %198 = vsyncpa [#allocation3], 1

</llo_original>
